<compile_context>
chip_gen: v6e
topology: v6e:2x2x1
jax: 0.10.0
libtpu: 0.0.40
codegen_flags: <defaults>
</compile_context>

<pallas_src>
import functools

import jax
import jax.numpy as jnp
from jax.experimental import pallas as pl
from jax.experimental.pallas import tpu as pltpu


# ----------------------------- kernel bodies ------------------------------ #

def _ldc_kernel_single(x_ref, w_ref, b_ref, o_ref):
    # Single reduction step (no k axis): out = x @ W + b, bias in the epilogue.
    acc = jnp.dot(x_ref[...], w_ref[...], preferred_element_type=jnp.float32)
    o_ref[...] = (acc + b_ref[...].astype(jnp.float32)).astype(o_ref.dtype)


def _ldc_kernel_kloop_f32out(x_ref, w_ref, b_ref, o_ref):
    # f32 output: accumulate directly into the resident output block
    # (out index_map ignores k), no scratch accumulator needed.
    @pl.when(pl.program_id(2) == 0)
    def _():
        o_ref[...] = jnp.broadcast_to(b_ref[...], o_ref.shape).astype(o_ref.dtype)

    o_ref[...] += jnp.dot(x_ref[...], w_ref[...],
                          preferred_element_type=jnp.float32)


def _ldc_kernel_kloop_acc(x_ref, w_ref, b_ref, o_ref, acc_ref):
    # Generic-output path: f32 VMEM accumulator, bias folded into the init.
    k = pl.program_id(2)

    @pl.when(k == 0)
    def _():
        acc_ref[...] = jnp.broadcast_to(
            b_ref[...].astype(jnp.float32), acc_ref.shape)

    acc_ref[...] += jnp.dot(x_ref[...], w_ref[...],
                            preferred_element_type=jnp.float32)

    @pl.when(k == pl.num_programs(2) - 1)
    def _():
        o_ref[...] = acc_ref[...].astype(o_ref.dtype)


# ------------------------------ host wrapper ------------------------------ #

def _round_up(a, b):
    return (a + b - 1) // b * b


def pack_params(W, b):
    """One-time packing (hoist out of the per-call path).

    W: (M, in_dim, D), b: (M, D)  ->  W_all: (in_dim, M*D), b_all: (1, M*D)
    with W_all[:, m*D:(m+1)*D] == W[m].
    """
    M, in_dim, D = W.shape
    W_all = jnp.transpose(W, (1, 0, 2)).reshape(in_dim, M * D)
    b_all = b.reshape(1, M * D)
    return W_all, b_all


def linear_disentangle(x, W_all, b_all, *, compute_dtype=None,
                       k_single_max=2048):
    """x: (N, in_dim), W_all: (in_dim, M*D), b_all: (1, M*D) -> (N, M*D).

    Equivalent to torch.cat([x @ W[m] + b[m] for m in range(M)], dim=-1),
    with dropout in eval mode (identity).
    """
    N, K = x.shape
    K_w, Dout = W_all.shape
    assert K == K_w, "x / W_all in_dim mismatch"
    out_dtype = x.dtype

    if compute_dtype is not None:
        # bf16 MXU path (full-rate matmul, half HBM/VMEM traffic); accumulation
        # stays f32 via preferred_element_type and the f32 accumulator.
        x = x.astype(compute_dtype)
        W_all = W_all.astype(compute_dtype)

    # ---- tile selection (256-aligned where it matters for v6e/v7x MXU) ----
    # Output-column tile: lane-dense, >=128 (pad Dout up if tiny).
    if Dout >= 512:
        tj = 512
    elif Dout >= 256:
        tj = 256
    else:
        tj = 128
    # Row tile: modest so v7x (64 MiB VMEM, 2 TCs) still gets >=2 N-tiles for
    # reasonably sized batches; tiny batches use a single padded block.
    if N >= 512:
        tn = 256
    elif N >= 128:
        tn = 128
    else:
        tn = _round_up(max(N, 1), 8)

    use_kloop = K > k_single_max
    if use_kloop:
        # Reduction tile: multiple of 128 (lane constraint on the x block).
        tk = 1024 if K >= 1024 else (512 if K >= 512 else (256 if K >= 256 else 128))
        K_pad = _round_up(K, tk)
        bk = tk                           # x block K-extent
    else:
        K_pad = K                         # full dim -> no (8,128) requirement
        bk = K_pad

    N_pad = _round_up(N, tn)
    Dout_pad = _round_up(Dout, tj)

    # ---- zero padding (zeros contribute nothing to the GEMM; sliced off) ----
    if N_pad != N or K_pad != K:
        x = jnp.pad(x, ((0, N_pad - N), (0, K_pad - K)))
    if K_pad != K or Dout_pad != Dout:
        W_all = jnp.pad(W_all, ((0, K_pad - K), (0, Dout_pad - Dout)))
    if Dout_pad != Dout:
        b_all = jnp.pad(b_all, ((0, 0), (0, Dout_pad - Dout)))

    n_n = N_pad // tn
    n_j = Dout_pad // tj

    x_isz = jnp.dtype(x.dtype).itemsize
    w_isz = jnp.dtype(W_all.dtype).itemsize
    b_isz = jnp.dtype(b_all.dtype).itemsize
    o_isz = jnp.dtype(out_dtype).itemsize

    # ---- grid / specs ----
    if use_kloop:
        grid = (n_n, n_j, K_pad // tk)
        in_specs = [
            pl.BlockSpec((tn, tk), lambda n, j, k: (n, k)),     # x tile
            pl.BlockSpec((tk, tj), lambda n, j, k: (k, j)),     # packed W slice
            pl.BlockSpec((1, tj), lambda n, j, k: (0, j)),      # bias slice
        ]
        out_specs = pl.BlockSpec((tn, tj), lambda n, j, k: (n, j))
        dims = ("parallel", "parallel", "arbitrary")
        if jnp.dtype(out_dtype) == jnp.dtype(jnp.float32):
            kernel = _ldc_kernel_kloop_f32out
            scratch_shapes = []
            acc_bytes = 0
        else:
            kernel = _ldc_kernel_kloop_acc
            scratch_shapes = [pltpu.VMEM((tn, tj), jnp.float32)]
            acc_bytes = tn * tj * 4
    else:
        grid = (n_n, n_j)
        in_specs = [
            pl.BlockSpec((tn, K_pad), lambda n, j: (n, 0)),     # x rows (fetched once)
            pl.BlockSpec((K_pad, tj), lambda n, j: (0, j)),     # resident W column slab
            pl.BlockSpec((1, tj), lambda n, j: (0, j)),         # bias slice
        ]
        out_specs = pl.BlockSpec((tn, tj), lambda n, j: (n, j))
        dims = ("parallel", "parallel")
        kernel = _ldc_kernel_single
        scratch_shapes = []
        acc_bytes = 0

    # ---- VMEM budget: double-buffered blocks + accumulator, with headroom ----
    footprint = (2 * tn * bk * x_isz          # x double buffer
                 + 2 * bk * tj * w_isz        # W double buffer
                 + 2 * tj * b_isz             # bias double buffer
                 + 2 * tn * tj * o_isz        # out double buffer
                 + acc_bytes)
    vmem_limit = int(min(max(2 * footprint, 32 * 1024 * 1024),
                         64 * 1024 * 1024))

    # ---- cost estimate (accounts for x / W re-streaming under this tiling) ----
    cost = pl.CostEstimate(
        flops=2 * N_pad * K_pad * Dout_pad,
        transcendentals=0,
        bytes_accessed=(
            N_pad * K_pad * x_isz * (n_j if use_kloop else 1)   # x (re)reads
            + K_pad * Dout_pad * w_isz * n_n                    # W re-read per N tile
            + Dout_pad * b_isz * n_n                            # bias (negligible)
            + N_pad * Dout_pad * o_isz                          # output write
        ),
    )

    out = pl.pallas_call(
        kernel,
        out_shape=jax.ShapeDtypeStruct((N_pad, Dout_pad), out_dtype),
        grid_spec=pltpu.PrefetchScalarGridSpec(
            num_scalar_prefetch=0,
            grid=grid,
            in_specs=in_specs,
            out_specs=out_specs,
            scratch_shapes=scratch_shapes,
        ),
        compiler_params=pltpu.CompilerParams(
            dimension_semantics=dims,
            vmem_limit_bytes=vmem_limit,
        ),
        cost_estimate=cost,
    )(x, W_all, b_all)

    if (N_pad, Dout_pad) != (N, Dout):
        out = out[:N, :Dout]
    return out


def init_params(key, in_dim, out_dim, M):
    """Glorot-uniform weights, zero biases (as in reset_parameters)."""
    D = out_dim // M
    stdv = (6.0 / (in_dim + D)) ** 0.5
    W = jax.random.uniform(key, (M, in_dim, D), jnp.float32, -stdv, stdv)
    b = jnp.zeros((M, D), jnp.float32)
    return W, b


def _reference(x, W, b):
    M = W.shape[0]
    return jnp.concatenate([x @ W[m] + b[m] for m in range(M)], axis=-1)


if __name__ == "__main__":
    key = jax.random.PRNGKey(0)

    # ---- test 1: tiny shapes from the module (single-reduction path,
    #              Dout=16 padded up to a lane-dense 128-wide output tile) ----
    N, in_dim, out_dim, M = 8, 32, 16, 4
    k1, k2, k3, k4 = jax.random.split(key, 4)
    x = jax.random.normal(k1, (N, in_dim), jnp.float32)
    W, _ = init_params(k2, in_dim, out_dim, M)
    b = 0.1 * jax.random.normal(k3, (M, out_dim // M), jnp.float32)
    W_all, b_all = pack_params(W, b)              # packed once, reused per call
    out = jax.block_until_ready(linear_disentangle(x, W_all, b_all))
    ref = _reference(x, W, b)
    assert out.shape == (N, out_dim)
    assert jnp.allclose(out, ref, atol=1e-4, rtol=1e-4)

    # ---- test 2: force the k-loop path (f32 direct-output accumulation) and
    #              non-divisible in_dim (192 -> padded to 256, 2 k-steps) ----
    N2, in_dim2, out_dim2, M2 = 16, 192, 256, 2
    x2 = jax.random.normal(k4, (N2, in_dim2), jnp.float32)
    W2, _ = init_params(k2, in_dim2, out_dim2, M2)
    b2 = 0.1 * jax.random.normal(k3, (M2, out_dim2 // M2), jnp.float32)
    W2_all, b2_all = pack_params(W2, b2)
    out2 = jax.block_until_ready(
        linear_disentangle(x2, W2_all, b2_all, k_single_max=128))
    ref2 = _reference(x2, W2, b2)
    assert out2.shape == (N2, out_dim2)
    assert jnp.allclose(out2, ref2, atol=1e-4, rtol=1e-4)

    # ---- test 3: bf16 inputs/outputs -> exercises the scratch-accumulator
    #              k-loop kernel (f32 accumulation, bf16 store) ----
    x3 = x2.astype(jnp.bfloat16)
    W3_all = W2_all.astype(jnp.bfloat16)
    b3_all = b2_all.astype(jnp.bfloat16)
    out3 = jax.block_until_ready(
        linear_disentangle(x3, W3_all, b3_all, k_single_max=128))
    ref3 = (x3.astype(jnp.float32) @ W3_all.astype(jnp.float32)
            + b3_all.astype(jnp.float32))
    assert out3.shape == (N2, out_dim2)
    assert jnp.allclose(out3.astype(jnp.float32), ref3, atol=5e-2, rtol=5e-2)

    print("KERNEL_OK")
</pallas_src>

<mosaic_0001>
module attributes {stable_mosaic.version = 11 : i64} {
  func.func @_ldc_kernel_single(%arg0: i32, %arg1: i32, %arg2: memref<8x32xf32, #tpu.memory_space<vmem>>, %arg3: memref<32x128xf32, #tpu.memory_space<vmem>>, %arg4: memref<1x128xf32, #tpu.memory_space<vmem>>, %arg5: memref<8x128xf32, #tpu.memory_space<vmem>>) attributes {dimension_semantics = [#tpu.dimension_semantics<parallel>, #tpu.dimension_semantics<parallel>], iteration_bounds = array<i64: 1, 1>, scalar_prefetch = 0 : i64, scratch_operands = 0 : i64, tpu.core_type = #tpu.core_type<tc>, window_params = [{transform_indices = @transform_0, window_bounds = array<i64: 8, 32>}, {transform_indices = @transform_1, window_bounds = array<i64: 32, 128>}, {transform_indices = @transform_2, window_bounds = array<i64: 1, 128>}, {transform_indices = @transform_3, window_bounds = array<i64: 8, 128>}]} {
    %c0 = arith.constant 0 : index
    %c0_0 = arith.constant 0 : index
    %0 = vector.load %arg2[%c0, %c0_0] : memref<8x32xf32, #tpu.memory_space<vmem>>, vector<8x32xf32>
    %c0_1 = arith.constant 0 : index
    %c0_2 = arith.constant 0 : index
    %1 = vector.load %arg3[%c0_1, %c0_2] : memref<32x128xf32, #tpu.memory_space<vmem>>, vector<32x128xf32>
    %cst = arith.constant dense<0.000000e+00> : vector<8x128xf32>
    %2 = tpu.matmul %0, %1, %cst {dimension_numbers = #tpu.dot_dimension_numbers<[1], [0], [0], [1], [0, 0, 1, 1], [], []>} : vector<8x32xf32>, vector<32x128xf32>, vector<8x128xf32> -> vector<8x128xf32>
    %c0_3 = arith.constant 0 : index
    %c0_4 = arith.constant 0 : index
    %3 = vector.load %arg4[%c0_3, %c0_4] : memref<1x128xf32, #tpu.memory_space<vmem>>, vector<1x128xf32>
    %4 = vector.broadcast %3 : vector<1x128xf32> to vector<8x128xf32>
    %5 = arith.addf %2, %4 : vector<8x128xf32>
    %c0_5 = arith.constant 0 : index
    %c0_6 = arith.constant 0 : index
    %6 = vector.load %arg5[%c0_5, %c0_6] : memref<8x128xf32, #tpu.memory_space<vmem>>, vector<8x128xf32>
    tpu.vector_store %arg5[%c0_5, %c0_6], %5 {strides = array<i32>} : memref<8x128xf32, #tpu.memory_space<vmem>>, vector<8x128xf32>,
    return
  }
  func.func @transform_0(%arg0: i32, %arg1: i32) -> (i32, i32) {
    %c0_i32 = arith.constant 0 : i32
    %c0_i32_0 = arith.constant 0 : i32
    return %arg0, %c0_i32 : i32, i32
  }
  func.func @transform_1(%arg0: i32, %arg1: i32) -> (i32, i32) {
    %c0_i32 = arith.constant 0 : i32
    %c0_i32_0 = arith.constant 0 : i32
    return %c0_i32, %arg1 : i32, i32
  }
  func.func @transform_2(%arg0: i32, %arg1: i32) -> (i32, i32) {
    %c0_i32 = arith.constant 0 : i32
    %c0_i32_0 = arith.constant 0 : i32
    return %c0_i32, %arg1 : i32, i32
  }
  func.func @transform_3(%arg0: i32, %arg1: i32) -> (i32, i32) {
    %c0_i32 = arith.constant 0 : i32
    return %arg0, %arg1 : i32, i32
  }
}

</mosaic_0001>

<llo_original>
// kernel: tpu_custom_call.1
$region0: #{tpu_custom_call.1}
  #allocation0 [shape = 'u32[]', space=smem, size = 0x4, offset = 0x4, fixed_abs, tag = 'smem constant byte address 0x4 - core index']
  #allocation1 [shape = 'u32[144,128]{1,0:T(1,128)}', space=vmem, size = 0x12000, scoped, tag = 'internal scratch']
  %s0 = inlined_call_operand.hbm [shape: f32[8,32], index: 0, kind: input, shape index: {}]
  %s1 = inlined_call_operand.hbm [shape: f32[32,128], index: 1, kind: input, shape index: {}]
  %s2 = inlined_call_operand.vmem [shape: f32[1,128], index: 2, kind: input, shape index: {}]
  %s3 = inlined_call_operand.hbm [shape: f32[8,128], index: 3, kind: output, shape index: {}]
  %s4 = sld [smem:[#allocation0]]
  $region30: #{tpu_custom_call.1} parent=0
    _
  %s6 = ssub.s32 1, %s4
  %s7 = scalar_select 0, %s6, %s4
  $region1: #{tpu_custom_call.1} parent=0
    #allocation2 [shape = 'u8[4096]{0}', space=vmem, size = 0x1000, scoped, tag = 'input window, operand 0, single buffered']
    #allocation3 [shape = 's32[1]{0}', space=sflag, size = 0x4, scoped, tag = 'scoped memory for tpu_custom_call.1']
    #allocation4 [shape = 's32[1]{0}', space=sflag, size = 0x4, scoped, tag = 'scoped memory for tpu_custom_call.1']
    #allocation5 [shape = 'u8[16384]{0}', space=vmem, size = 0x4000, scoped, tag = 'input window, operand 1, single buffered']
    #allocation6 [shape = 's32[1]{0}', space=sflag, size = 0x4, scoped, tag = 'scoped memory for tpu_custom_call.1']
    #allocation7 [shape = 'u8[4096]{0}', space=vmem, size = 0x1000, scoped, tag = 'output window, operand 0, single buffered']
    %8 = vsyncpa [#allocation3], 0
    %9 = vsyncpa [#allocation6], 0
    %10 = vsyncpa [#allocation4], 0
    // Predicated region
    $region2: #{tpu_custom_call.1} parent=1 // pred_check
      _
    $region3: #{tpu_custom_call.1} parent=1 // pred_check_branch
      %12 = sbr.rel (0) target = $region5
    $region4: #{tpu_custom_call.1} parent=1 // pred_region
      %s14 = ssub.s32 128, 128
      %15 = vsyncadd [#allocation3], %s14
      %s17 = sshll.u32 [#allocation2], 4
      %s18 = int_to_ptr.vmem [resolvable:$true] %s17
      %20 = dma.hbm_to_vmem [thread:$0]  %s0, 128, %s18, [#allocation3]
    $region5: #{tpu_custom_call.1} parent=1 // pred_fallthru
      _
    // Predicated region
    $region6: #{tpu_custom_call.1} parent=1 // pred_check
      _
    $region7: #{tpu_custom_call.1} parent=1 // pred_check_branch
      %22 = sbr.rel (0) target = $region9
    $region8: #{tpu_custom_call.1} parent=1 // pred_region
      %s24 = ssub.s32 512, 512
      %25 = vsyncadd [#allocation6], %s24
      %s26 = sshll.u32 [#allocation5], 4
      %s27 = int_to_ptr.vmem [resolvable:$true] %s26
      %32 = dma.hbm_to_vmem [thread:$0]  %s1, 512, %s27, [#allocation6], 128, 128, 8
    $region9: #{tpu_custom_call.1} parent=1 // pred_fallthru
      _
    // Predicated region
    $region10: #{tpu_custom_call.1} parent=1 // pred_check
      _
    $region11: #{tpu_custom_call.1} parent=1 // pred_check_branch
      %34 = sbr.rel (0) target = $region13
    $region12: #{tpu_custom_call.1} parent=1 // pred_region
      _
    $region13: #{tpu_custom_call.1} parent=1 // pred_fallthru
      _
    // Predicated region
    $region14: #{tpu_custom_call.1} parent=1 // pred_check
      _
    $region15: #{tpu_custom_call.1} parent=1 // pred_check_branch
      %36 = sbr.rel (0) target = $region17
    $region16: #{tpu_custom_call.1} parent=1 // pred_region
      %37 = dma.done [#allocation3], 128
    $region17: #{tpu_custom_call.1} parent=1 // pred_fallthru
      _
    // Predicated region
    $region18: #{tpu_custom_call.1} parent=1 // pred_check
      _
    $region19: #{tpu_custom_call.1} parent=1 // pred_check_branch
      %39 = sbr.rel (0) target = $region21
    $region20: #{tpu_custom_call.1} parent=1 // pred_region
      %40 = dma.done [#allocation6], 512
    $region21: #{tpu_custom_call.1} parent=1 // pred_fallthru
      _
    %v41 = vld [vmem:[#allocation2] sm:$0xff]
    %v42 = vld [vmem:[#allocation5] sm:$0xff]
    %v43 = vld [vmem:[#allocation5 + $0x8] sm:$0xff]
    %v44 = vld [vmem:[#allocation5 + $0x10] sm:$0xff]
    %v45 = vld [vmem:[#allocation5 + $0x18] sm:$0xff]
    %v46 = vld [vmem:[%s2] sm:$0x1]
    %v48 = vlaneseq
    %v49 = vshrl.u32 %v48, 7
    %v50 = vsub.s32 0, %v49
    %v51 = vrot.slane %v46, %v50
    %vm53 = vcmask 261120
    %v55 = vsel %vm53, %v41, 0
    %57 = vmatprep.subr.mxu0 0.0
    %58 = vmatpush1.msra.mxu0 0.0
    %59 = vmatprep.subr.mxu0 0.0
    %60 = vmatpush1.msra.mxu0 0.0
    %61 = vmatprep.subr.mxu0 0.0
    %62 = vmatpush1.msra.mxu0 0.0
    %63 = vmatprep.subr.mxu0 0.0
    %64 = vmatpush1.msra.mxu0 0.0
    %65 = vmatprep.subr.mxu0 0.0
    %66 = vmatpush1.msra.mxu0 0.0
    %67 = vmatprep.subr.mxu0 0.0
    %68 = vmatpush1.msra.mxu0 0.0
    %69 = vmatprep.subr.mxu0 0.0
    %70 = vmatpush1.msra.mxu0 0.0
    %71 = vmatprep.subr.mxu0 0.0
    %72 = vmatpush1.msra.mxu0 0.0
    %73 = vmatprep.subr.mxu0 0.0
    %74 = vmatpush1.msra.mxu0 0.0
    %75 = vmatprep.subr.mxu0 0.0
    %76 = vmatpush1.msra.mxu0 0.0
    %77 = vmatprep.subr.mxu0 0.0
    %78 = vmatpush1.msra.mxu0 0.0
    %79 = vmatprep.subr.mxu0 0.0
    %80 = vmatpush1.msra.mxu0 0.0
    %81 = vmatprep.subr.mxu0 0.0
    %82 = vmatpush1.msra.mxu0 %v45
    %83 = vmatprep.subr.mxu0 0.0
    %84 = vmatpush1.msra.mxu0 %v44
    %85 = vmatprep.subr.mxu0 0.0
    %86 = vmatpush1.msra.mxu0 %v43
    %87 = vmatprep.subr.mxu0 0.0
    %88 = vmatpush1.msra.mxu0 %v42
    %89 = vmatprep.subr.mxu0 0.0
    %90 = vmatpush2.msra.mxu0 0.0
    %91 = vmatprep.subr.mxu0 0.0
    %92 = vmatpush2.msra.mxu0 0.0
    %93 = vmatprep.subr.mxu0 0.0
    %94 = vmatpush2.msra.mxu0 0.0
    %95 = vmatprep.subr.mxu0 0.0
    %96 = vmatpush2.msra.mxu0 0.0
    %97 = vmatprep.subr.mxu0 0.0
    %98 = vmatpush2.msra.mxu0 0.0
    %99 = vmatprep.subr.mxu0 0.0
    %100 = vmatpush2.msra.mxu0 0.0
    %101 = vmatprep.subr.mxu0 0.0
    %102 = vmatpush2.msra.mxu0 0.0
    %103 = vmatprep.subr.mxu0 0.0
    %104 = vmatpush2.msra.mxu0 0.0
    %105 = vmatprep.subr.mxu0 0.0
    %106 = vmatpush2.msra.mxu0 0.0
    %107 = vmatprep.subr.mxu0 0.0
    %108 = vmatpush2.msra.mxu0 0.0
    %109 = vmatprep.subr.mxu0 0.0
    %110 = vmatpush2.msra.mxu0 0.0
    %111 = vmatprep.subr.mxu0 0.0
    %112 = vmatpush2.msra.mxu0 0.0
    %113 = vmatprep.subr.mxu0 0.0
    %114 = vmatpush2.msra.mxu0 0.0
    %115 = vmatprep.subr.mxu0 0.0
    %116 = vmatpush2.msra.mxu0 0.0
    %117 = vmatprep.subr.mxu0 0.0
    %118 = vmatpush2.msra.mxu0 0.0
    %119 = vmatprep.subr.mxu0 0.0
    %120 = vmatpush2.msra.mxu0 0.0
    %121 = vmatprep.mubr.f32.mxu0 0.0
    %122 = vmatmul.mubr.f32.gmra.mxu0 %v55
    %v123 = vpop.f32.mrf.mxu0
    %v124 = vadd.f32 %v51, %v123
    %v125 = vpop.f32.mrf.mxu0
    %126 = vdwg.mxu0
    %127 = vst [vmem:[#allocation7] sm:$0xff] %v124
    // Predicated region
    $region22: #{tpu_custom_call.1} parent=1 // pred_check
      _
    $region23: #{tpu_custom_call.1} parent=1 // pred_check_branch
      %129 = sbr.rel (0) target = $region25
    $region24: #{tpu_custom_call.1} parent=1 // pred_region
      %s131 = ssub.s32 128, 128
      %132 = vsyncadd [#allocation4], %s131
      %s134 = sshll.u32 [#allocation7], 4
      %s135 = int_to_ptr.vmem [resolvable:$true] %s134
      %137 = dma.vmem_to_hbm [thread:$0]  %s135, 128, %s3, [#allocation4]
    $region25: #{tpu_custom_call.1} parent=1 // pred_fallthru
      _
    // Predicated region
    $region26: #{tpu_custom_call.1} parent=1 // pred_check
      _
    $region27: #{tpu_custom_call.1} parent=1 // pred_check_branch
      %139 = sbr.rel (0) target = $region29
    $region28: #{tpu_custom_call.1} parent=1 // pred_region
      %140 = dma.done [#allocation4], 128
    $region29: #{tpu_custom_call.1} parent=1 // pred_fallthru
      _
    %141 = vsyncpa [#allocation3], 1
    %142 = vsyncpa [#allocation6], 1
    %143 = vsyncpa [#allocation4], 1

</llo_original>
